<compile_context>
chip_gen: v5e
topology: v5e:2x2
jax: 0.10.0
libtpu: 0.0.40
codegen_flags: <defaults>
</compile_context>

<pallas_src>
import functools
import math

import jax
import jax.numpy as jnp
from jax.experimental import pallas as pl
from jax.experimental.pallas import tpu as pltpu


_NT = (((1,), (1,)), ((), ()))          # contract dim 1 of both operands (A @ B^T)
_VMEM_LIMIT = 48 * 1024 * 1024          # conservative for v7x (64 MiB / TC)


def _round_up(x, m):
    return ((x + m - 1) // m) * m


# ---------------------------------------------------------------------------
# Kernel 1 (prologue): down = x @ W_down^T   -> (M, Rp), computed exactly once
# ---------------------------------------------------------------------------
def lora_down_kernel(x_ref, w_down_ref, down_ref, acc_ref):
    k = pl.program_id(1)

    @pl.when(k == 0)
    def _():
        acc_ref[...] = jnp.zeros_like(acc_ref)

    # (tm, tk) . (Rp, tk)^T -> (tm, Rp)   [MXU, f32 accumulation]
    acc_ref[...] += jax.lax.dot_general(
        x_ref[...], w_down_ref[...], dimension_numbers=_NT,
        preferred_element_type=jnp.float32)

    @pl.when(k == pl.num_programs(1) - 1)
    def _():
        down_ref[...] = acc_ref[...].astype(down_ref.dtype)


# ---------------------------------------------------------------------------
# Kernel 2 (main): out = x @ W_org^T + b + down @ W_up^T
# ---------------------------------------------------------------------------
def lora_main_kernel(x_ref, w_org_ref, b_ref, down_ref, w_up_ref, o_ref, acc_ref):
    k = pl.program_id(2)

    @pl.when(k == 0)
    def _():
        acc_ref[...] = jnp.zeros_like(acc_ref)

    # org partial product: (tm, tk) . (tn, tk)^T -> (tm, tn)  [MXU, f32 acc]
    acc_ref[...] += jax.lax.dot_general(
        x_ref[...], w_org_ref[...], dimension_numbers=_NT,
        preferred_element_type=jnp.float32)

    @pl.when(k == pl.num_programs(2) - 1)
    def _():
        # LoRA up: (tm, Rp) . (tn, Rp)^T in the compute dtype (bf16 x bf16 on
        # the MXU-peak path); bias added once; a single output store.
        lora = jax.lax.dot_general(
            down_ref[...], w_up_ref[...], dimension_numbers=_NT,
            preferred_element_type=jnp.float32)
        out = acc_ref[...] + lora + b_ref[...].astype(jnp.float32)
        o_ref[...] = out.astype(o_ref.dtype)


# ---------------------------------------------------------------------------
# Fused 2-D forward: weights are pre-padded / pre-cast (done once at load time)
# ---------------------------------------------------------------------------
def _fused_lora_2d(x2d, w_org_p, b_p, w_down_p, w_up_p, *, n_out, tm, tn, tk):
    """x2d:(M,K) unpadded.  Pre-padded params:
       w_org_p:(Np,Kp)  b_p:(1,Np) f32  w_down_p:(Rp,Kp)  w_up_p:(Np,Rp)."""
    M, K = x2d.shape
    Np, Kp = w_org_p.shape
    Rp = w_up_p.shape[1]
    cd = w_org_p.dtype                      # compute dtype (bf16 by default)
    out_dtype = x2d.dtype
    ib = jnp.dtype(cd).itemsize
    ob = jnp.dtype(out_dtype).itemsize

    tm = min(tm, _round_up(M, 8))
    Mp = _round_up(M, tm)
    assert Np % tn == 0 and Kp % tk == 0    # guaranteed by _LoRAParams

    # Only x is padded / cast per call; weights were prepared once.
    x_p = jnp.pad(x2d, ((0, Mp - M), (0, Kp - K))).astype(cd)

    gi, gj, gk = Mp // tm, Np // tn, Kp // tk

    # ---- prologue: LoRA down projection (computed once, not once per N tile)
    down_cost = pl.CostEstimate(
        flops=2 * Mp * Rp * Kp, transcendentals=0,
        bytes_accessed=int(Mp * Kp * ib + Rp * Kp * ib * gi + Mp * Rp * ib))
    down_p = pl.pallas_call(
        lora_down_kernel,
        out_shape=jax.ShapeDtypeStruct((Mp, Rp), cd),
        grid_spec=pltpu.PrefetchScalarGridSpec(
            num_scalar_prefetch=0,
            grid=(gi, gk),
            in_specs=[
                pl.BlockSpec((tm, tk), lambda i, k: (i, k)),      # x
                pl.BlockSpec((Rp, tk), lambda i, k: (0, k)),      # W_down (Rp,K)
            ],
            out_specs=pl.BlockSpec((tm, Rp), lambda i, k: (i, 0)),
            scratch_shapes=[pltpu.VMEM((tm, Rp), jnp.float32)]),
        compiler_params=pltpu.CompilerParams(
            dimension_semantics=("parallel", "arbitrary"),
            vmem_limit_bytes=_VMEM_LIMIT),
        cost_estimate=down_cost,
    )(x_p, w_down_p)

    # ---- main: org matmul + bias + LoRA up, fused; i and j both parallel
    main_cost = pl.CostEstimate(
        flops=2 * Mp * Np * Kp + 2 * Mp * Rp * Np, transcendentals=0,
        bytes_accessed=int(Mp * Kp * ib * gj          # x re-read per j
                           + Np * Kp * ib * gi        # W_org re-read per i
                           + Mp * Rp * ib * gj        # down re-read per j
                           + Np * Rp * ib * gi        # W_up re-read per i
                           + Np * 4 * gi              # bias
                           + Mp * Np * ob))           # output written once
    out_p = pl.pallas_call(
        lora_main_kernel,
        out_shape=jax.ShapeDtypeStruct((Mp, Np), out_dtype),
        grid_spec=pltpu.PrefetchScalarGridSpec(
            num_scalar_prefetch=0,
            grid=(gi, gj, gk),
            in_specs=[
                pl.BlockSpec((tm, tk), lambda i, j, k: (i, k)),   # x
                pl.BlockSpec((tn, tk), lambda i, j, k: (j, k)),   # W_org (N,K)
                pl.BlockSpec((1, tn), lambda i, j, k: (0, j)),    # bias
                pl.BlockSpec((tm, Rp), lambda i, j, k: (i, 0)),   # down (M,Rp)
                pl.BlockSpec((tn, Rp), lambda i, j, k: (j, 0)),   # W_up (N,Rp)
            ],
            out_specs=pl.BlockSpec((tm, tn), lambda i, j, k: (i, j)),
            scratch_shapes=[pltpu.VMEM((tm, tn), jnp.float32)]),
        compiler_params=pltpu.CompilerParams(
            dimension_semantics=("parallel", "parallel", "arbitrary"),
            vmem_limit_bytes=_VMEM_LIMIT),
        cost_estimate=main_cost,
    )(x_p, w_org_p, b_p, down_p, w_up_p)

    return out_p[:M, :n_out]


_fused_lora_2d_jit = jax.jit(
    _fused_lora_2d, static_argnames=("n_out", "tm", "tn", "tk"))


# ---------------------------------------------------------------------------
# Glue: im2col (feature order (c, kh, kw), matching the torch weight reshape)
# ---------------------------------------------------------------------------
def im2col_nchw(x, kh, kw, stride, pad):
    # TODO(synk): move patch extraction in-kernel (strided DMA over an NHWC
    # HBM ref / per-(kh,kw) BlockSpec offsets) to avoid the kh*kw HBM blowup
    # and the NCHW<->NHWC layout shuffles for large conv layers.
    B, C, H, W = x.shape
    xp = jnp.pad(x, ((0, 0), (0, 0), (pad, pad), (pad, pad)))
    Ho = (H + 2 * pad - kh) // stride + 1
    Wo = (W + 2 * pad - kw) // stride + 1
    patches = []
    for i in range(kh):
        for j in range(kw):
            patches.append(xp[:, :, i:i + Ho * stride:stride,
                                     j:j + Wo * stride:stride])      # (B,C,Ho,Wo)
    p = jnp.stack(patches, axis=2)                                   # (B,C,kh*kw,Ho,Wo)
    p = p.reshape(B, C * kh * kw, Ho, Wo)                            # feature = (c,kh,kw)
    p = p.transpose(0, 2, 3, 1).reshape(B * Ho * Wo, C * kh * kw)    # (M, K)
    return p, Ho, Wo


@functools.partial(jax.jit, static_argnames=("kh", "kw", "stride", "pad",
                                             "n_out", "tm", "tn", "tk"))
def _lora_conv2d_forward(x, w_org_p, b_p, w_down_p, w_up_p, *,
                         kh, kw, stride, pad, n_out, tm, tn, tk):
    B = x.shape[0]
    patches, Ho, Wo = im2col_nchw(x, kh, kw, stride, pad)            # (M, Cin*kh*kw)
    y2d = _fused_lora_2d(patches, w_org_p, b_p, w_down_p, w_up_p,
                         n_out=n_out, tm=tm, tn=tn, tk=tk)
    return y2d.reshape(B, Ho, Wo, n_out).transpose(0, 3, 1, 2)       # back to NCHW


# ---------------------------------------------------------------------------
# Parameter preparation (done ONCE at load time): pad + cast all weights
# ---------------------------------------------------------------------------
class _LoRAParams:
    def __init__(self, w_org2, b_org, w_down2, w_up2, *, compute_dtype,
                 tm, tn, tk, rank_pad):
        N, K = w_org2.shape
        R = w_up2.shape[1]
        cd = compute_dtype
        tn = min(tn, _round_up(N, 128))
        tk = min(tk, _round_up(K, 128))
        Np, Kp, Rp = _round_up(N, tn), _round_up(K, tk), _round_up(R, rank_pad)
        if b_org is None:
            b_org = jnp.zeros((N,), jnp.float32)
        self.n_out = N
        self.tm, self.tn, self.tk = tm, tn, tk
        self.w_org = jnp.pad(w_org2.astype(cd), ((0, Np - N), (0, Kp - K)))
        self.bias = jnp.pad(b_org.astype(jnp.float32), (0, Np - N)).reshape(1, Np)
        self.w_down = jnp.pad(w_down2.astype(cd), ((0, Rp - R), (0, Kp - K)))
        self.w_up = jnp.pad(w_up2.astype(cd), ((0, Np - N), (0, Rp - R)))


class LoRALinear:
    """LoRAModule wrapping a Linear: y = x @ W^T + b + (x @ Wd^T) @ Wu^T."""

    def __init__(self, w_org, b_org, w_down, w_up, *,
                 compute_dtype=jnp.bfloat16, tm=512, tn=512, tk=1024,
                 rank_pad=128):
        self.p = _LoRAParams(w_org, b_org, w_down, w_up,
                             compute_dtype=compute_dtype, tm=tm, tn=tn, tk=tk,
                             rank_pad=rank_pad)

    def __call__(self, x):
        p = self.p
        x2d = x.reshape(-1, x.shape[-1])
        y2d = _fused_lora_2d_jit(x2d, p.w_org, p.bias, p.w_down, p.w_up,
                                 n_out=p.n_out, tm=p.tm, tn=p.tn, tk=p.tk)
        return y2d.reshape(x.shape[:-1] + (p.n_out,))


class LoRAConv2d:
    """LoRAModule wrapping a Conv2d (NCHW); LoRA-up is a 1x1 conv."""

    def __init__(self, w_org, b_org, w_down, w_up, *, stride=1, pad=1,
                 compute_dtype=jnp.bfloat16, tm=512, tn=512, tk=1024,
                 rank_pad=128):
        cout, cin, kh, kw = w_org.shape
        r = w_down.shape[0]
        self.kh, self.kw, self.stride, self.pad = kh, kw, stride, pad
        self.p = _LoRAParams(w_org.reshape(cout, cin * kh * kw), b_org,
                             w_down.reshape(r, cin * kh * kw),
                             w_up.reshape(cout, r),
                             compute_dtype=compute_dtype, tm=tm, tn=tn, tk=tk,
                             rank_pad=rank_pad)

    def __call__(self, x):
        p = self.p
        return _lora_conv2d_forward(x, p.w_org, p.bias, p.w_down, p.w_up,
                                    kh=self.kh, kw=self.kw, stride=self.stride,
                                    pad=self.pad, n_out=p.n_out,
                                    tm=p.tm, tn=p.tn, tk=p.tk)


# ---------------------------------------------------------------------------
# Deterministic parameter init mirroring the PyTorch module
# (kaiming_uniform_(a=sqrt(5)) -> U(-1/sqrt(fan_in), 1/sqrt(fan_in)); lora_up = 0)
# ---------------------------------------------------------------------------
def _uniform(key, shape, bound):
    return jax.random.uniform(key, shape, jnp.float32, -bound, bound)


if __name__ == "__main__":
    key = jax.random.PRNGKey(0)
    keys = jax.random.split(key, 10)

    # ------------------------- Linear LoRA module -------------------------
    B, S, IN, OUT, R = 2, 8, 32, 32, 8
    x_lin = jax.random.normal(keys[0], (B, S, IN), jnp.float32)
    w_org_l = _uniform(keys[1], (OUT, IN), 1.0 / math.sqrt(IN))     # org Linear weight
    b_org_l = _uniform(keys[2], (OUT,), 1.0 / math.sqrt(IN))        # org Linear bias
    w_down_l = _uniform(keys[3], (R, IN), 1.0 / math.sqrt(IN))      # kaiming_uniform(a=sqrt(5))
    w_up_l0 = jnp.zeros((OUT, R), jnp.float32)                      # zeros_ (module init)
    w_up_l1 = _uniform(keys[8], (OUT, R), 0.1)                      # exercise LoRA branch

    def lin_ref(x, wo, bo, wd, wu):
        return (jnp.einsum('bsi,oi->bso', x, wo) + bo
                + jnp.einsum('bsr,or->bso',
                             jnp.einsum('bsi,ri->bsr', x, wd), wu))

    for w_up_l in (w_up_l0, w_up_l1):
        ref = lin_ref(x_lin, w_org_l, b_org_l, w_down_l, w_up_l)
        # Exact f32-operand path.
        mod32 = LoRALinear(w_org_l, b_org_l, w_down_l, w_up_l,
                           compute_dtype=jnp.float32)
        y32 = jax.block_until_ready(mod32(x_lin))
        assert y32.shape == (B, S, OUT)
        assert jnp.allclose(y32, ref, rtol=1e-3, atol=1e-3), \
            float(jnp.max(jnp.abs(y32 - ref)))
        # Default bf16-operand / f32-accumulation path (MXU-peak config).
        mod16 = LoRALinear(w_org_l, b_org_l, w_down_l, w_up_l)
        y16 = jax.block_until_ready(mod16(x_lin))
        assert jnp.allclose(y16, ref, rtol=5e-2, atol=5e-2), \
            float(jnp.max(jnp.abs(y16 - ref)))

    # ------------------------- Conv2d LoRA module -------------------------
    Bc, CIN, COUT, H, W, KH, KW, RC = 2, 4, 8, 16, 16, 3, 3, 8
    fan_in = CIN * KH * KW
    x_conv = jax.random.normal(keys[4], (Bc, CIN, H, W), jnp.float32)
    w_org_c = _uniform(keys[5], (COUT, CIN, KH, KW), 1.0 / math.sqrt(fan_in))
    b_org_c = _uniform(keys[6], (COUT,), 1.0 / math.sqrt(fan_in))
    w_down_c = _uniform(keys[7], (RC, CIN, KH, KW), 1.0 / math.sqrt(fan_in))
    w_up_c0 = jnp.zeros((COUT, RC, 1, 1), jnp.float32)              # zeros_ (module init)
    w_up_c1 = _uniform(keys[9], (COUT, RC, 1, 1), 0.1)              # exercise LoRA branch

    dn = ('NCHW', 'OIHW', 'NCHW')

    def conv_ref(x, wo, bo, wd, wu):
        org = jax.lax.conv_general_dilated(
            x, wo, (1, 1), ((1, 1), (1, 1)), dimension_numbers=dn)
        down = jax.lax.conv_general_dilated(
            x, wd, (1, 1), ((1, 1), (1, 1)), dimension_numbers=dn)
        up = jax.lax.conv_general_dilated(
            down, wu, (1, 1), ((0, 0), (0, 0)), dimension_numbers=dn)
        return org + bo.reshape(1, -1, 1, 1) + up

    for w_up_c in (w_up_c0, w_up_c1):
        ref = conv_ref(x_conv, w_org_c, b_org_c, w_down_c, w_up_c)
        mod32 = LoRAConv2d(w_org_c, b_org_c, w_down_c, w_up_c, stride=1, pad=1,
                           compute_dtype=jnp.float32)
        y32 = jax.block_until_ready(mod32(x_conv))
        assert y32.shape == (Bc, COUT, H, W)
        assert jnp.allclose(y32, ref, rtol=1e-3, atol=1e-3), \
            float(jnp.max(jnp.abs(y32 - ref)))
        mod16 = LoRAConv2d(w_org_c, b_org_c, w_down_c, w_up_c, stride=1, pad=1)
        y16 = jax.block_until_ready(mod16(x_conv))
        assert jnp.allclose(y16, ref, rtol=5e-2, atol=5e-2), \
            float(jnp.max(jnp.abs(y16 - ref)))

    print("KERNEL_OK")
</pallas_src>

<mosaic_0001>
module attributes {stable_mosaic.version = 11 : i64} {
  func.func @lora_down_kernel(%arg0: i32, %arg1: i32, %arg2: memref<16x128xf32, #tpu.memory_space<vmem>>, %arg3: memref<128x128xf32, #tpu.memory_space<vmem>>, %arg4: memref<16x128xf32, #tpu.memory_space<vmem>>, %arg5: memref<16x128xf32, #tpu.memory_space<vmem>>) attributes {dimension_semantics = [#tpu.dimension_semantics<parallel>, #tpu.dimension_semantics<arbitrary>], iteration_bounds = array<i64: 1, 1>, scalar_prefetch = 0 : i64, scratch_operands = 1 : i64, tpu.core_type = #tpu.core_type<tc>, window_params = [{transform_indices = @transform_0, window_bounds = array<i64: 16, 128>}, {transform_indices = @transform_1, window_bounds = array<i64: 128, 128>}, {transform_indices = @transform_2, window_bounds = array<i64: 16, 128>}]} {
    %c0_i32 = arith.constant 0 : i32
    %0 = arith.cmpi eq, %arg1, %c0_i32 : i32
    %1 = arith.extui %0 : i1 to i32
    %c0_i32_0 = arith.constant 0 : i32
    %2 = arith.cmpi ne, %1, %c0_i32_0 : i32
    scf.if %2 {
      %cst_10 = arith.constant 0.000000e+00 : f32
      %12 = vector.broadcast %cst_10 : f32 to vector<16x128xf32>
      %c0_11 = arith.constant 0 : index
      %c0_12 = arith.constant 0 : index
      %13 = vector.load %arg5[%c0_11, %c0_12] : memref<16x128xf32, #tpu.memory_space<vmem>>, vector<16x128xf32>
      tpu.vector_store %arg5[%c0_11, %c0_12], %12 {strides = array<i32>} : memref<16x128xf32, #tpu.memory_space<vmem>>, vector<16x128xf32>,
    } else {
    }
    %c0 = arith.constant 0 : index
    %c0_1 = arith.constant 0 : index
    %3 = vector.load %arg5[%c0, %c0_1] : memref<16x128xf32, #tpu.memory_space<vmem>>, vector<16x128xf32>
    %c0_2 = arith.constant 0 : index
    %c0_3 = arith.constant 0 : index
    %4 = vector.load %arg2[%c0_2, %c0_3] : memref<16x128xf32, #tpu.memory_space<vmem>>, vector<16x128xf32>
    %c0_4 = arith.constant 0 : index
    %c0_5 = arith.constant 0 : index
    %5 = vector.load %arg3[%c0_4, %c0_5] : memref<128x128xf32, #tpu.memory_space<vmem>>, vector<128x128xf32>
    %cst = arith.constant dense<0.000000e+00> : vector<16x128xf32>
    %6 = tpu.matmul %4, %5, %cst {dimension_numbers = #tpu.dot_dimension_numbers<[1], [1], [0], [0], [0, 0, 1, 0], [], []>} : vector<16x128xf32>, vector<128x128xf32>, vector<16x128xf32> -> vector<16x128xf32>
    %7 = arith.addf %3, %6 : vector<16x128xf32>
    %c0_6 = arith.constant 0 : index
    %c0_7 = arith.constant 0 : index
    %8 = vector.load %arg5[%c0_6, %c0_7] : memref<16x128xf32, #tpu.memory_space<vmem>>, vector<16x128xf32>
    tpu.vector_store %arg5[%c0_6, %c0_7], %7 {strides = array<i32>} : memref<16x128xf32, #tpu.memory_space<vmem>>, vector<16x128xf32>,
    %c0_i32_8 = arith.constant 0 : i32
    %9 = arith.cmpi eq, %arg1, %c0_i32_8 : i32
    %10 = arith.extui %9 : i1 to i32
    %c0_i32_9 = arith.constant 0 : i32
    %11 = arith.cmpi ne, %10, %c0_i32_9 : i32
    scf.if %11 {
      %c0_10 = arith.constant 0 : index
      %c0_11 = arith.constant 0 : index
      %12 = vector.load %arg5[%c0_10, %c0_11] : memref<16x128xf32, #tpu.memory_space<vmem>>, vector<16x128xf32>
      %c0_12 = arith.constant 0 : index
      %c0_13 = arith.constant 0 : index
      %13 = vector.load %arg4[%c0_12, %c0_13] : memref<16x128xf32, #tpu.memory_space<vmem>>, vector<16x128xf32>
      tpu.vector_store %arg4[%c0_12, %c0_13], %12 {strides = array<i32>} : memref<16x128xf32, #tpu.memory_space<vmem>>, vector<16x128xf32>,
    } else {
    }
    return
  }
  func.func @transform_0(%arg0: i32, %arg1: i32) -> (i32, i32) {
    %c0_i32 = arith.constant 0 : i32
    return %arg0, %arg1 : i32, i32
  }
  func.func @transform_1(%arg0: i32, %arg1: i32) -> (i32, i32) {
    %c0_i32 = arith.constant 0 : i32
    %c0_i32_0 = arith.constant 0 : i32
    return %c0_i32, %arg1 : i32, i32
  }
  func.func @transform_2(%arg0: i32, %arg1: i32) -> (i32, i32) {
    %c0_i32 = arith.constant 0 : i32
    %c0_i32_0 = arith.constant 0 : i32
    return %arg0, %c0_i32 : i32, i32
  }
}

module attributes {stable_mosaic.version = 11 : i64} {
  func.func @lora_main_kernel(%arg0: i32, %arg1: i32, %arg2: i32, %arg3: memref<16x128xf32, #tpu.memory_space<vmem>>, %arg4: memref<128x128xf32, #tpu.memory_space<vmem>>, %arg5: memref<1x128xf32, #tpu.memory_space<vmem>>, %arg6: memref<16x128xf32, #tpu.memory_space<vmem>>, %arg7: memref<128x128xf32, #tpu.memory_space<vmem>>, %arg8: memref<16x128xf32, #tpu.memory_space<vmem>>, %arg9: memref<16x128xf32, #tpu.memory_space<vmem>>) attributes {dimension_semantics = [#tpu.dimension_semantics<parallel>, #tpu.dimension_semantics<parallel>, #tpu.dimension_semantics<arbitrary>], iteration_bounds = array<i64: 1, 1, 1>, scalar_prefetch = 0 : i64, scratch_operands = 1 : i64, tpu.core_type = #tpu.core_type<tc>, window_params = [{transform_indices = @transform_0, window_bounds = array<i64: 16, 128>}, {transform_indices = @transform_1, window_bounds = array<i64: 128, 128>}, {transform_indices = @transform_2, window_bounds = array<i64: 1, 128>}, {transform_indices = @transform_3, window_bounds = array<i64: 16, 128>}, {transform_indices = @transform_4, window_bounds = array<i64: 128, 128>}, {transform_indices = @transform_5, window_bounds = array<i64: 16, 128>}]} {
    %c0_i32 = arith.constant 0 : i32
    %0 = arith.cmpi eq, %arg2, %c0_i32 : i32
    %1 = arith.extui %0 : i1 to i32
    %c0_i32_0 = arith.constant 0 : i32
    %2 = arith.cmpi ne, %1, %c0_i32_0 : i32
    scf.if %2 {
      %cst_10 = arith.constant 0.000000e+00 : f32
      %12 = vector.broadcast %cst_10 : f32 to vector<16x128xf32>
      %c0_11 = arith.constant 0 : index
      %c0_12 = arith.constant 0 : index
      %13 = vector.load %arg9[%c0_11, %c0_12] : memref<16x128xf32, #tpu.memory_space<vmem>>, vector<16x128xf32>
      tpu.vector_store %arg9[%c0_11, %c0_12], %12 {strides = array<i32>} : memref<16x128xf32, #tpu.memory_space<vmem>>, vector<16x128xf32>,
    } else {
    }
    %c0 = arith.constant 0 : index
    %c0_1 = arith.constant 0 : index
    %3 = vector.load %arg9[%c0, %c0_1] : memref<16x128xf32, #tpu.memory_space<vmem>>, vector<16x128xf32>
    %c0_2 = arith.constant 0 : index
    %c0_3 = arith.constant 0 : index
    %4 = vector.load %arg3[%c0_2, %c0_3] : memref<16x128xf32, #tpu.memory_space<vmem>>, vector<16x128xf32>
    %c0_4 = arith.constant 0 : index
    %c0_5 = arith.constant 0 : index
    %5 = vector.load %arg4[%c0_4, %c0_5] : memref<128x128xf32, #tpu.memory_space<vmem>>, vector<128x128xf32>
    %cst = arith.constant dense<0.000000e+00> : vector<16x128xf32>
    %6 = tpu.matmul %4, %5, %cst {dimension_numbers = #tpu.dot_dimension_numbers<[1], [1], [0], [0], [0, 0, 1, 0], [], []>} : vector<16x128xf32>, vector<128x128xf32>, vector<16x128xf32> -> vector<16x128xf32>
    %7 = arith.addf %3, %6 : vector<16x128xf32>
    %c0_6 = arith.constant 0 : index
    %c0_7 = arith.constant 0 : index
    %8 = vector.load %arg9[%c0_6, %c0_7] : memref<16x128xf32, #tpu.memory_space<vmem>>, vector<16x128xf32>
    tpu.vector_store %arg9[%c0_6, %c0_7], %7 {strides = array<i32>} : memref<16x128xf32, #tpu.memory_space<vmem>>, vector<16x128xf32>,
    %c0_i32_8 = arith.constant 0 : i32
    %9 = arith.cmpi eq, %arg2, %c0_i32_8 : i32
    %10 = arith.extui %9 : i1 to i32
    %c0_i32_9 = arith.constant 0 : i32
    %11 = arith.cmpi ne, %10, %c0_i32_9 : i32
    scf.if %11 {
      %c0_10 = arith.constant 0 : index
      %c0_11 = arith.constant 0 : index
      %12 = vector.load %arg6[%c0_10, %c0_11] : memref<16x128xf32, #tpu.memory_space<vmem>>, vector<16x128xf32>
      %c0_12 = arith.constant 0 : index
      %c0_13 = arith.constant 0 : index
      %13 = vector.load %arg7[%c0_12, %c0_13] : memref<128x128xf32, #tpu.memory_space<vmem>>, vector<128x128xf32>
      %cst_14 = arith.constant dense<0.000000e+00> : vector<16x128xf32>
      %14 = tpu.matmul %12, %13, %cst_14 {dimension_numbers = #tpu.dot_dimension_numbers<[1], [1], [0], [0], [0, 0, 1, 0], [], []>} : vector<16x128xf32>, vector<128x128xf32>, vector<16x128xf32> -> vector<16x128xf32>
      %c0_15 = arith.constant 0 : index
      %c0_16 = arith.constant 0 : index
      %15 = vector.load %arg9[%c0_15, %c0_16] : memref<16x128xf32, #tpu.memory_space<vmem>>, vector<16x128xf32>
      %16 = arith.addf %15, %14 : vector<16x128xf32>
      %c0_17 = arith.constant 0 : index
      %c0_18 = arith.constant 0 : index
      %17 = vector.load %arg5[%c0_17, %c0_18] : memref<1x128xf32, #tpu.memory_space<vmem>>, vector<1x128xf32>
      %18 = vector.broadcast %17 : vector<1x128xf32> to vector<16x128xf32>
      %19 = arith.addf %16, %18 : vector<16x128xf32>
      %c0_19 = arith.constant 0 : index
      %c0_20 = arith.constant 0 : index
      %20 = vector.load %arg8[%c0_19, %c0_20] : memref<16x128xf32, #tpu.memory_space<vmem>>, vector<16x128xf32>
      tpu.vector_store %arg8[%c0_19, %c0_20], %19 {strides = array<i32>} : memref<16x128xf32, #tpu.memory_space<vmem>>, vector<16x128xf32>,
    } else {
    }
    return
  }
  func.func @transform_0(%arg0: i32, %arg1: i32, %arg2: i32) -> (i32, i32) {
    %c0_i32 = arith.constant 0 : i32
    return %arg0, %arg2 : i32, i32
  }
  func.func @transform_1(%arg0: i32, %arg1: i32, %arg2: i32) -> (i32, i32) {
    %c0_i32 = arith.constant 0 : i32
    return %arg1, %arg2 : i32, i32
  }
  func.func @transform_2(%arg0: i32, %arg1: i32, %arg2: i32) -> (i32, i32) {
    %c0_i32 = arith.constant 0 : i32
    %c0_i32_0 = arith.constant 0 : i32
    return %c0_i32, %arg1 : i32, i32
  }
  func.func @transform_3(%arg0: i32, %arg1: i32, %arg2: i32) -> (i32, i32) {
    %c0_i32 = arith.constant 0 : i32
    %c0_i32_0 = arith.constant 0 : i32
    return %arg0, %c0_i32 : i32, i32
  }
  func.func @transform_4(%arg0: i32, %arg1: i32, %arg2: i32) -> (i32, i32) {
    %c0_i32 = arith.constant 0 : i32
    %c0_i32_0 = arith.constant 0 : i32
    return %arg1, %c0_i32 : i32, i32
  }
  func.func @transform_5(%arg0: i32, %arg1: i32, %arg2: i32) -> (i32, i32) {
    %c0_i32 = arith.constant 0 : i32
    return %arg0, %arg1 : i32, i32
  }
}

</mosaic_0001>

<llo_original>
// kernel: _fused_lora_2d.2
$region0: #{_fused_lora_2d.2}
  #allocation0 [shape = 'u32[]', space=smem, size = 0x4, offset = 0x4, fixed_abs, tag = 'smem constant byte address 0x4 - core index']
  #allocation1 [shape = 'u32[72,128]{1,0:T(1,128)}', space=vmem, size = 0x9000, scoped, tag = 'internal scratch']
  #allocation2 [shape = 'f32[16,128]{1,0:T(8,128)}', space=vmem, size = 0x2000, scoped, tag = 'scratch operand']
  %s0 = inlined_call_operand.vmem [shape: f32[16,128], index: 0, kind: input, shape index: {}]
  %s1 = inlined_call_operand.hbm [shape: f32[128,128], index: 1, kind: input, shape index: {}]
  %s2 = inlined_call_operand.vmem [shape: f32[16,128], index: 2, kind: output, shape index: {}]
  %s3 = sld [smem:[#allocation0]]
  $region30: #{_fused_lora_2d.2} parent=0
    _
  %s5 = ssub.s32 1, %s3
  %s6 = scalar_select 0, %s5, %s3
  $region1: #{_fused_lora_2d.2} parent=0
    #allocation3 [shape = 'u8[65536]{0}', space=vmem, size = 0x10000, scoped, tag = 'input window, operand 1, single buffered']
    #allocation4 [shape = 's32[1]{0}', space=sflag, size = 0x4, scoped, tag = 'scoped memory for _fused_lora_2d.2']
    %7 = vsyncpa [#allocation4], 0
    // Predicated region
    $region2: #{_fused_lora_2d.2} parent=1 // pred_check
      _
    $region3: #{_fused_lora_2d.2} parent=1 // pred_check_branch
      %9 = sbr.rel (0) target = $region5
    $region4: #{_fused_lora_2d.2} parent=1 // pred_region
      _
    $region5: #{_fused_lora_2d.2} parent=1 // pred_fallthru
      _
    // Predicated region
    $region6: #{_fused_lora_2d.2} parent=1 // pred_check
      _
    $region7: #{_fused_lora_2d.2} parent=1 // pred_check_branch
      %11 = sbr.rel (0) target = $region9
    $region8: #{_fused_lora_2d.2} parent=1 // pred_region
      %13 = vsyncadd [#allocation4], 0
      %s14 = sshll.u32 %s1, 4
      %s15 = int_to_ptr.hbm [resolvable:$true] %s14
      %s16 = sshll.u32 [#allocation3], 4
      %s17 = int_to_ptr.vmem [resolvable:$true] %s16
      %22 = dma.hbm_to_vmem [thread:$0]  %s15, 2048, %s17, [#allocation4], 128, 128, 8
    $region9: #{_fused_lora_2d.2} parent=1 // pred_fallthru
      _
    // Predicated region
    $region10: #{_fused_lora_2d.2} parent=1 // pred_check
      _
    $region11: #{_fused_lora_2d.2} parent=1 // pred_check_branch
      %24 = sbr.rel (0) target = $region13
    $region12: #{_fused_lora_2d.2} parent=1 // pred_region
      %26 = dma.done [#allocation4], 2048
    $region13: #{_fused_lora_2d.2} parent=1 // pred_fallthru
      _
    %p27 = scmp.eq.s32.totalorder 0, 0
    // Predicated region
    $region14: #{_fused_lora_2d.2} parent=1 // pred_check
      %p28 = pneg %p27
    $region15: #{_fused_lora_2d.2} parent=1 // pred_check_branch
      %30 = sbr.rel (%p28) target = $region17
    $region16: #{_fused_lora_2d.2} parent=1 // pred_region
      %31 = vst [vmem:[#allocation2] sm:$0xff] 0.0
      %32 = vst [vmem:[#allocation2 + $0x8] sm:$0xff] 0.0
    $region17: #{_fused_lora_2d.2} parent=1 // pred_fallthru
      _
    %v33 = vld [vmem:[#allocation2] sm:$0xff]
    %v34 = vld [vmem:[#allocation2 + $0x8] sm:$0xff]
    %v35 = vld [vmem:[%s0] sm:$0xff]
    %v36 = vld [vmem:[%s0 + $0x8] sm:$0xff]
    %v37 = vld [vmem:[#allocation3] sm:$0xff]
    %v38 = vld [vmem:[#allocation3 + $0x8] sm:$0xff]
    %v39 = vld [vmem:[#allocation3 + $0x10] sm:$0xff]
    %v40 = vld [vmem:[#allocation3 + $0x18] sm:$0xff]
    %v41 = vld [vmem:[#allocation3 + $0x20] sm:$0xff]
    %v42 = vld [vmem:[#allocation3 + $0x28] sm:$0xff]
    %v43 = vld [vmem:[#allocation3 + $0x30] sm:$0xff]
    %v44 = vld [vmem:[#allocation3 + $0x38] sm:$0xff]
    %v45 = vld [vmem:[#allocation3 + $0x40] sm:$0xff]
    %v46 = vld [vmem:[#allocation3 + $0x48] sm:$0xff]
    %v47 = vld [vmem:[#allocation3 + $0x50] sm:$0xff]
    %v48 = vld [vmem:[#allocation3 + $0x58] sm:$0xff]
    %v49 = vld [vmem:[#allocation3 + $0x60] sm:$0xff]
    %v50 = vld [vmem:[#allocation3 + $0x68] sm:$0xff]
    %v51 = vld [vmem:[#allocation3 + $0x70] sm:$0xff]
    %v52 = vld [vmem:[#allocation3 + $0x78] sm:$0xff]
    %53 = vmatpush.xpose.msra.mxu0 %v52
    %54 = vmatpush.xpose.msra.mxu0 %v51
    %55 = vmatpush.xpose.msra.mxu0 %v50
    %56 = vmatpush.xpose.msra.mxu0 %v49
    %57 = vmatpush.xpose.msra.mxu0 %v48
    %58 = vmatpush.xpose.msra.mxu0 %v47
    %59 = vmatpush.xpose.msra.mxu0 %v46
    %60 = vmatpush.xpose.msra.mxu0 %v45
    %61 = vmatpush.xpose.msra.mxu0 %v44
    %62 = vmatpush.xpose.msra.mxu0 %v43
    %63 = vmatpush.xpose.msra.mxu0 %v42
    %64 = vmatpush.xpose.msra.mxu0 %v41
    %65 = vmatpush.xpose.msra.mxu0 %v40
    %66 = vmatpush.xpose.msra.mxu0 %v39
    %67 = vmatpush.xpose.msra.mxu0 %v38
    %68 = vmatpush.xpose.msra.mxu0 %v37
    %69 = vmatmul.f32.gmra.mxu0 %v35
    %v70 = vpop.f32.mrf.mxu0
    %v71 = vadd.f32 0.0, %v70
    %72 = vmatmul.f32.gmra.mxu0 %v36
    %v73 = vpop.f32.mrf.mxu0
    %v74 = vadd.f32 0.0, %v73
    %75 = vdwg.mxu0
    %v76 = vadd.f32 %v33, %v71
    %v77 = vadd.f32 %v34, %v74
    %78 = vst [vmem:[#allocation2] sm:$0xff] %v76
    %79 = vst [vmem:[#allocation2 + $0x8] sm:$0xff] %v77
    // Predicated region
    $region18: #{_fused_lora_2d.2} parent=1 // pred_check
      %p80 = pneg %p27
    $region19: #{_fused_lora_2d.2} parent=1 // pred_check_branch
      %82 = sbr.rel (%p80) target = $region21
    $region20: #{_fused_lora_2d.2} parent=1 // pred_region
      %v83 = vld [vmem:[#allocation2] sm:$0xff]
      %v84 = vld [vmem:[#allocation2 + $0x8] sm:$0xff]
      %85 = vst [vmem:[%s2] sm:$0xff] %v83
      %86 = vst [vmem:[%s2 + $0x8] sm:$0xff] %v84
    $region21: #{_fused_lora_2d.2} parent=1 // pred_fallthru
      _
    // Predicated region
    $region22: #{_fused_lora_2d.2} parent=1 // pred_check
      _
    $region23: #{_fused_lora_2d.2} parent=1 // pred_check_branch
      %88 = sbr.rel (0) target = $region25
    $region24: #{_fused_lora_2d.2} parent=1 // pred_region
      _
    $region25: #{_fused_lora_2d.2} parent=1 // pred_fallthru
      _
    // Predicated region
    $region26: #{_fused_lora_2d.2} parent=1 // pred_check
      _
    $region27: #{_fused_lora_2d.2} parent=1 // pred_check_branch
      %90 = sbr.rel (0) target = $region29
    $region28: #{_fused_lora_2d.2} parent=1 // pred_region
      _
    $region29: #{_fused_lora_2d.2} parent=1 // pred_fallthru
      _
    %91 = vsyncpa [#allocation4], 1

// kernel: _fused_lora_2d.3
$region0: #{_fused_lora_2d.3}
  #allocation0 [shape = 'u32[]', space=smem, size = 0x4, offset = 0x4, fixed_abs, tag = 'smem constant byte address 0x4 - core index']
  #allocation1 [shape = 'u32[72,128]{1,0:T(1,128)}', space=vmem, size = 0x9000, scoped, tag = 'internal scratch']
  #allocation2 [shape = 'f32[16,128]{1,0:T(8,128)}', space=vmem, size = 0x2000, scoped, tag = 'scratch operand']
  %s0 = inlined_call_operand.vmem [shape: f32[16,128], index: 0, kind: input, shape index: {}]
  %s1 = inlined_call_operand.vmem [shape: f32[128,128], index: 1, kind: input, shape index: {}]
  %s2 = inlined_call_operand.vmem [shape: f32[1,128], index: 2, kind: input, shape index: {}]
  %s3 = inlined_call_operand.vmem [shape: f32[16,128], index: 3, kind: input, shape index: {}]
  %s4 = inlined_call_operand.hbm [shape: f32[128,128], index: 4, kind: input, shape index: {}]
  %s5 = inlined_call_operand.hbm [shape: f32[16,128], index: 5, kind: output, shape index: {}]
  %s6 = sld [smem:[#allocation0]]
  $region42: #{_fused_lora_2d.3} parent=0
    _
  %s8 = ssub.s32 1, %s6
  %s9 = scalar_select 0, %s8, %s6
  $region1: #{_fused_lora_2d.3} parent=0
    #allocation3 [shape = 'u8[65536]{0}', space=vmem, size = 0x10000, scoped, tag = 'input window, operand 4, single buffered']
    #allocation4 [shape = 's32[1]{0}', space=sflag, size = 0x4, scoped, tag = 'scoped memory for _fused_lora_2d.3']
    #allocation5 [shape = 's32[1]{0}', space=sflag, size = 0x4, scoped, tag = 'scoped memory for _fused_lora_2d.3']
    #allocation6 [shape = 'u8[8192]{0}', space=vmem, size = 0x2000, scoped, tag = 'output window, operand 0, single buffered']
    %10 = vsyncpa [#allocation4], 0
    %11 = vsyncpa [#allocation5], 0
    // Predicated region
    $region2: #{_fused_lora_2d.3} parent=1 // pred_check
      _
    $region3: #{_fused_lora_2d.3} parent=1 // pred_check_branch
      %13 = sbr.rel (0) target = $region5
    $region4: #{_fused_lora_2d.3} parent=1 // pred_region
      _
    $region5: #{_fused_lora_2d.3} parent=1 // pred_fallthru
      _
    // Predicated region
    $region6: #{_fused_lora_2d.3} parent=1 // pred_check
      _
    $region7: #{_fused_lora_2d.3} parent=1 // pred_check_branch
      %15 = sbr.rel (0) target = $region9
    $region8: #{_fused_lora_2d.3} parent=1 // pred_region
      _
    $region9: #{_fused_lora_2d.3} parent=1 // pred_fallthru
      _
    // Predicated region
    $region10: #{_fused_lora_2d.3} parent=1 // pred_check
      _
    $region11: #{_fused_lora_2d.3} parent=1 // pred_check_branch
      %17 = sbr.rel (0) target = $region13
    $region12: #{_fused_lora_2d.3} parent=1 // pred_region
      _
    $region13: #{_fused_lora_2d.3} parent=1 // pred_fallthru
      _
    // Predicated region
    $region14: #{_fused_lora_2d.3} parent=1 // pred_check
      _
    $region15: #{_fused_lora_2d.3} parent=1 // pred_check_branch
      %19 = sbr.rel (0) target = $region17
    $region16: #{_fused_lora_2d.3} parent=1 // pred_region
      _
    $region17: #{_fused_lora_2d.3} parent=1 // pred_fallthru
      _
    // Predicated region
    $region18: #{_fused_lora_2d.3} parent=1 // pred_check
      _
    $region19: #{_fused_lora_2d.3} parent=1 // pred_check_branch
      %21 = sbr.rel (0) target = $region21
    $region20: #{_fused_lora_2d.3} parent=1 // pred_region
      %23 = vsyncadd [#allocation4], 0
      %s24 = sshll.u32 %s4, 4
      %s25 = int_to_ptr.hbm [resolvable:$true] %s24
      %s26 = sshll.u32 [#allocation3], 4
      %s27 = int_to_ptr.vmem [resolvable:$true] %s26
      %32 = dma.hbm_to_vmem [thread:$0]  %s25, 2048, %s27, [#allocation4], 128, 128, 8
    $region21: #{_fused_lora_2d.3} parent=1 // pred_fallthru
      _
    // Predicated region
    $region22: #{_fused_lora_2d.3} parent=1 // pred_check
      _
    $region23: #{_fused_lora_2d.3} parent=1 // pred_check_branch
      %34 = sbr.rel (0) target = $region25
    $region24: #{_fused_lora_2d.3} parent=1 // pred_region
      %36 = dma.done [#allocation4], 2048
    $region25: #{_fused_lora_2d.3} parent=1 // pred_fallthru
      _
    %p37 = scmp.eq.s32.totalorder 0, 0
    // Predicated region
    $region26: #{_fused_lora_2d.3} parent=1 // pred_check
      %p38 = pneg %p37
    $region27: #{_fused_lora_2d.3} parent=1 // pred_check_branch
      %40 = sbr.rel (%p38) target = $region29
    $region28: #{_fused_lora_2d.3} parent=1 // pred_region
      %41 = vst [vmem:[#allocation2] sm:$0xff] 0.0
      %42 = vst [vmem:[#allocation2 + $0x8] sm:$0xff] 0.0
    $region29: #{_fused_lora_2d.3} parent=1 // pred_fallthru
      _
    %v43 = vld [vmem:[#allocation2] sm:$0xff]
    %v44 = vld [vmem:[#allocation2 + $0x8] sm:$0xff]
    %v45 = vld [vmem:[%s0] sm:$0xff]
    %v46 = vld [vmem:[%s0 + $0x8] sm:$0xff]
    %v47 = vld [vmem:[%s1] sm:$0xff]
    %v48 = vld [vmem:[%s1 + $0x8] sm:$0xff]
    %v49 = vld [vmem:[%s1 + $0x10] sm:$0xff]
    %v50 = vld [vmem:[%s1 + $0x18] sm:$0xff]
    %v51 = vld [vmem:[%s1 + $0x20] sm:$0xff]
    %v52 = vld [vmem:[%s1 + $0x28] sm:$0xff]
    %v53 = vld [vmem:[%s1 + $0x30] sm:$0xff]
    %v54 = vld [vmem:[%s1 + $0x38] sm:$0xff]
    %v55 = vld [vmem:[%s1 + $0x40] sm:$0xff]
    %v56 = vld [vmem:[%s1 + $0x48] sm:$0xff]
    %v57 = vld [vmem:[%s1 + $0x50] sm:$0xff]
    %v58 = vld [vmem:[%s1 + $0x58] sm:$0xff]
    %v59 = vld [vmem:[%s1 + $0x60] sm:$0xff]
    %v60 = vld [vmem:[%s1 + $0x68] sm:$0xff]
    %v61 = vld [vmem:[%s1 + $0x70] sm:$0xff]
    %v62 = vld [vmem:[%s1 + $0x78] sm:$0xff]
    %63 = vmatpush.xpose.msra.mxu0 %v62
    %64 = vmatpush.xpose.msra.mxu0 %v61
    %65 = vmatpush.xpose.msra.mxu0 %v60
    %66 = vmatpush.xpose.msra.mxu0 %v59
    %67 = vmatpush.xpose.msra.mxu0 %v58
    %68 = vmatpush.xpose.msra.mxu0 %v57
    %69 = vmatpush.xpose.msra.mxu0 %v56
    %70 = vmatpush.xpose.msra.mxu0 %v55
    %71 = vmatpush.xpose.msra.mxu0 %v54
    %72 = vmatpush.xpose.msra.mxu0 %v53
    %73 = vmatpush.xpose.msra.mxu0 %v52
    %74 = vmatpush.xpose.msra.mxu0 %v51
    %75 = vmatpush.xpose.msra.mxu0 %v50
    %76 = vmatpush.xpose.msra.mxu0 %v49
    %77 = vmatpush.xpose.msra.mxu0 %v48
    %78 = vmatpush.xpose.msra.mxu0 %v47
    %79 = vmatmul.f32.gmra.mxu0 %v45
    %v80 = vpop.f32.mrf.mxu0
    %v81 = vadd.f32 0.0, %v80
    %82 = vmatmul.f32.gmra.mxu0 %v46
    %v83 = vpop.f32.mrf.mxu0
    %v84 = vadd.f32 0.0, %v83
    %85 = vdwg.mxu0
    %v86 = vadd.f32 %v43, %v81
    %v87 = vadd.f32 %v44, %v84
    %88 = vst [vmem:[#allocation2] sm:$0xff] %v86
    %89 = vst [vmem:[#allocation2 + $0x8] sm:$0xff] %v87
    // Predicated region
    $region30: #{_fused_lora_2d.3} parent=1 // pred_check
      %p90 = pneg %p37
    $region31: #{_fused_lora_2d.3} parent=1 // pred_check_branch
      %92 = sbr.rel (%p90) target = $region33
    $region32: #{_fused_lora_2d.3} parent=1 // pred_region
      %v93 = vld [vmem:[%s3] sm:$0xff]
      %v94 = vld [vmem:[%s3 + $0x8] sm:$0xff]
      %v95 = vld [vmem:[#allocation3] sm:$0xff]
      %v96 = vld [vmem:[#allocation3 + $0x8] sm:$0xff]
      %v97 = vld [vmem:[#allocation3 + $0x10] sm:$0xff]
      %v98 = vld [vmem:[#allocation3 + $0x18] sm:$0xff]
      %v99 = vld [vmem:[#allocation3 + $0x20] sm:$0xff]
      %v100 = vld [vmem:[#allocation3 + $0x28] sm:$0xff]
      %v101 = vld [vmem:[#allocation3 + $0x30] sm:$0xff]
      %v102 = vld [vmem:[#allocation3 + $0x38] sm:$0xff]
      %v103 = vld [vmem:[#allocation3 + $0x40] sm:$0xff]
      %v104 = vld [vmem:[#allocation3 + $0x48] sm:$0xff]
      %v105 = vld [vmem:[#allocation3 + $0x50] sm:$0xff]
      %v106 = vld [vmem:[#allocation3 + $0x58] sm:$0xff]
      %v107 = vld [vmem:[#allocation3 + $0x60] sm:$0xff]
      %v108 = vld [vmem:[#allocation3 + $0x68] sm:$0xff]
      %v109 = vld [vmem:[#allocation3 + $0x70] sm:$0xff]
      %v110 = vld [vmem:[#allocation3 + $0x78] sm:$0xff]
      %111 = vmatpush.xpose.msra.mxu0 %v110
      %112 = vmatpush.xpose.msra.mxu0 %v109
      %113 = vmatpush.xpose.msra.mxu0 %v108
      %114 = vmatpush.xpose.msra.mxu0 %v107
      %115 = vmatpush.xpose.msra.mxu0 %v106
      %116 = vmatpush.xpose.msra.mxu0 %v105
      %117 = vmatpush.xpose.msra.mxu0 %v104
      %118 = vmatpush.xpose.msra.mxu0 %v103
      %119 = vmatpush.xpose.msra.mxu0 %v102
      %120 = vmatpush.xpose.msra.mxu0 %v101
      %121 = vmatpush.xpose.msra.mxu0 %v100
      %122 = vmatpush.xpose.msra.mxu0 %v99
      %123 = vmatpush.xpose.msra.mxu0 %v98
      %124 = vmatpush.xpose.msra.mxu0 %v97
      %125 = vmatpush.xpose.msra.mxu0 %v96
      %126 = vmatpush.xpose.msra.mxu0 %v95
      %127 = vmatmul.f32.gmra.mxu0 %v93
      %v128 = vpop.f32.mrf.mxu0
      %v129 = vadd.f32 0.0, %v128
      %130 = vmatmul.f32.gmra.mxu0 %v94
      %v131 = vpop.f32.mrf.mxu0
      %v132 = vadd.f32 0.0, %v131
      %133 = vdwg.mxu0
      %v134 = vld [vmem:[#allocation2] sm:$0xff]
      %v135 = vld [vmem:[#allocation2 + $0x8] sm:$0xff]
      %v136 = vadd.f32 %v134, %v129
      %v137 = vadd.f32 %v135, %v132
      %v138 = vld [vmem:[%s2] sm:$0x1]
      %v140 = vperm.slane %v138, 0
      %v142 = vadd.f32 %v136, %v140
      %v143 = vadd.f32 %v137, %v140
      %144 = vst [vmem:[#allocation6] sm:$0xff] %v142
      %145 = vst [vmem:[#allocation6 + $0x8] sm:$0xff] %v143
    $region33: #{_fused_lora_2d.3} parent=1 // pred_fallthru
      _
    // Predicated region
    $region34: #{_fused_lora_2d.3} parent=1 // pred_check
      _
    $region35: #{_fused_lora_2d.3} parent=1 // pred_check_branch
      %147 = sbr.rel (0) target = $region37
    $region36: #{_fused_lora_2d.3} parent=1 // pred_region
      %149 = vsyncadd [#allocation5], 0
      %s150 = sshll.u32 [#allocation6], 4
      %s151 = int_to_ptr.vmem [resolvable:$true] %s150
      %s152 = sshll.u32 %s5, 4
      %s153 = int_to_ptr.hbm [resolvable:$true] %s152
      %158 = dma.vmem_to_hbm [thread:$0]  %s151, 256, %s153, [#allocation5], 128, 128, 8
    $region37: #{_fused_lora_2d.3} parent=1 // pred_fallthru
      _
    // Predicated region
    $region38: #{_fused_lora_2d.3} parent=1 // pred_check
      _
    $region39: #{_fused_lora_2d.3} parent=1 // pred_check_branch
      %160 = sbr.rel (0) target = $region41
    $region40: #{_fused_lora_2d.3} parent=1 // pred_region
      %162 = dma.done [#allocation5], 256
    $region41: #{_fused_lora_2d.3} parent=1 // pred_fallthru
      _
    %163 = vsyncpa [#allocation4], 1
    %164 = vsyncpa [#allocation5], 1

</llo_original>
